<compile_context>
chip_gen: v7x
topology: tpu7x:2x2x1
jax: 0.10.0
libtpu: 0.0.40
codegen_flags: <defaults>
</compile_context>

<pallas_src>
import functools

import jax
import jax.numpy as jnp
from jax import lax
from jax.experimental import pallas as pl
from jax.experimental.pallas import tpu as pltpu


DPAD = 128  # lane-dense padded feature width (multiple of the 128-lane vreg)
# TODO(synk): on v6e/v7x with production dims, pad to 256 to fill the 256-wide
#             MXU; 128 matches v5e's MXU and avoids over-padding the toy dims.


def _round_up(x, m):
    return ((x + m - 1) // m) * m


# ----------------------------------------------------------------------------
# Kernel 1 (per layer): h_all = relu(feat @ Wagg + bagg), computed once per
# node (hoisted out of the per-neighbor-slot loop).  Rows >= n_real are forced
# to zero so row `n_real` can serve as the gather sentinel for invalid /
# missing neighbor slots (and for padded index rows).
# ----------------------------------------------------------------------------
def _hall_kernel(x_ref, wagg_ref, bagg_ref, o_ref, *, n_real, tile_m):
    h = jnp.dot(x_ref[...], wagg_ref[...], preferred_element_type=jnp.float32)
    h = jnp.maximum(h + bagg_ref[...], 0.0)                 # relu(fc1(features))
    row0 = pl.program_id(0) * tile_m
    rows = row0 + lax.broadcasted_iota(jnp.int32, (tile_m, 1), 0)
    h = jnp.where(rows < n_real, h, 0.0)                    # zero sentinel/padding rows
    o_ref[...] = h.astype(o_ref.dtype)


def _aggregator_transform(feat, wagg, bagg, *, n_real, tile_m):
    n_pad, dpad = feat.shape
    kernel = functools.partial(_hall_kernel, n_real=n_real, tile_m=tile_m)
    return pl.pallas_call(
        kernel,
        out_shape=jax.ShapeDtypeStruct((n_pad, dpad), jnp.bfloat16),
        grid_spec=pltpu.PrefetchScalarGridSpec(
            num_scalar_prefetch=0,
            grid=(n_pad // tile_m,),
            in_specs=[
                pl.BlockSpec((tile_m, dpad), lambda i: (i, 0)),   # features
                pl.BlockSpec((dpad, dpad), lambda i: (0, 0)),     # Wagg (resident)
                pl.BlockSpec((1, dpad), lambda i: (0, 0)),        # bagg
            ],
            out_specs=pl.BlockSpec((tile_m, dpad), lambda i: (i, 0)),
        ),
        compiler_params=pltpu.CompilerParams(
            dimension_semantics=("parallel",),
            vmem_limit_bytes=32 * 1024 * 1024),
    )(feat, wagg, bagg)


# ----------------------------------------------------------------------------
# Kernel 2 (per layer): in-kernel neighbor gather (manual DMA from h_all in
# HBM, indices scalar-prefetched into SMEM) + S-way max pool + combine:
#   out = self @ Wself + maxpool(h_all[nbr]) @ Waggfc + bfc  (+ relu/BN/l2-norm)
# The self-path matmul overlaps with the gather DMAs.
# TODO(synk): cross-grid-step double-buffering of the gather (prefetch tile
#             i+1's rows during tile i's compute) is left for a follow-up.
# ----------------------------------------------------------------------------
def _combine_kernel(idx_ref, self_ref, h_hbm, wself_ref, waggfc_ref, bfc_ref,
                    o_ref, gbuf, sem, *, s, tile_m, apply_post):
    base = pl.program_id(0) * tile_m

    # --- issue per-(row, slot) gather DMAs from h_all (HBM) into the VMEM slab.
    @pl.loop(0, tile_m)
    def _(r):
        for j in range(s):                                   # S is small & static
            row = idx_ref[(base + r) * s + j]
            pltpu.make_async_copy(h_hbm.at[pl.ds(row, 1)],
                                  gbuf.at[j, pl.ds(r, 1)],
                                  sem.at[0]).start()

    # --- self path runs while the gather DMAs are in flight.
    x = jnp.dot(self_ref[...], wself_ref[...],
                preferred_element_type=jnp.float32) + bfc_ref[...]

    # --- wait for all s*tile_m row copies (size-matched descriptors).
    @pl.loop(0, s * tile_m)
    def _(k):
        pltpu.make_async_copy(h_hbm.at[pl.ds(0, 1)],
                              gbuf.at[0, pl.ds(0, 1)],
                              sem.at[0]).wait()

    # --- MaxPool over slots: invalid slots gathered the zero sentinel row and
    #     h_all >= 0 (post-ReLU), so a plain max reproduces -inf masking and
    #     no-neighbor rows pool to exactly 0.
    pooled = gbuf[0]
    for j in range(1, s):
        pooled = jnp.maximum(pooled, gbuf[j])

    x = x + jnp.dot(pooled, waggfc_ref[...], preferred_element_type=jnp.float32)

    if apply_post:
        x = jnp.maximum(x, 0.0)                              # relu
        # BatchNorm1d (eval, identity stats) folded into wself/waggfc/bfc.
        # Dropout (eval): identity.
        nrm = jnp.sqrt(jnp.sum(x * x, axis=1, keepdims=True))
        x = x * pl.reciprocal(nrm + 1e-6, approx=True)       # out / (||out|| + 1e-6)

    o_ref[...] = x.astype(o_ref.dtype)


def _combine(idx_flat, feat, h_all, lp, *, s, apply_post, tile_m, out_dtype):
    n_pad, dpad = feat.shape
    kernel = functools.partial(_combine_kernel, s=s, tile_m=tile_m,
                               apply_post=apply_post)
    return pl.pallas_call(
        kernel,
        out_shape=jax.ShapeDtypeStruct((n_pad, dpad), out_dtype),
        grid_spec=pltpu.PrefetchScalarGridSpec(
            num_scalar_prefetch=1,                           # idx_flat -> SMEM
            grid=(n_pad // tile_m,),
            in_specs=[
                pl.BlockSpec((tile_m, dpad), lambda i, idx: (i, 0)),   # self feats
                pl.BlockSpec(memory_space=pl.ANY),                     # h_all (HBM)
                pl.BlockSpec((dpad, dpad), lambda i, idx: (0, 0)),     # Wself
                pl.BlockSpec((dpad, dpad), lambda i, idx: (0, 0)),     # Waggfc
                pl.BlockSpec((1, dpad), lambda i, idx: (0, 0)),        # bfc
            ],
            out_specs=pl.BlockSpec((tile_m, dpad), lambda i, idx: (i, 0)),
            scratch_shapes=[
                pltpu.VMEM((s, tile_m, dpad), jnp.bfloat16),           # gather slab
                pltpu.SemaphoreType.DMA((1,)),
            ],
        ),
        compiler_params=pltpu.CompilerParams(
            dimension_semantics=("parallel",),
            vmem_limit_bytes=32 * 1024 * 1024),
    )(idx_flat, feat, h_all, lp["wself"], lp["waggfc"], lp["bfc"])


# ----------------------------------------------------------------------------
# GraphSAGE forward (2 layers, identity node mapping / fixed neighbor table).
# tile_m: 256-512 is a good production choice on v5e/v6e (128 MiB VMEM); on
# v7x budget against 64 MiB VMEM / 2 TensorCores (row axis is "parallel").
# ----------------------------------------------------------------------------
def graphsage_forward(features, nbr_idx, nbr_mask, layer_params, *,
                      hidden_dim, tile_m=256, dpad=DPAD):
    n, din = features.shape
    s = nbr_idx.shape[1]

    # Clamp the tile to the (toy) problem size; keep it a multiple of 16 for
    # bf16 sublane packing.  n_pad >= n + 1 so row `n` exists as the sentinel.
    tile_m = max(16, min(tile_m, _round_up(n + 1, 16)))
    n_pad = _round_up(n + 1, tile_m)

    feat = jnp.pad(features, ((0, n_pad - n), (0, dpad - din))).astype(jnp.bfloat16)

    # Neighbor index table: invalid slots and padded rows point at the zero
    # sentinel row `n` of h_all.  Flattened 1-D so SMEM padding stays small.
    idx = jnp.where(nbr_mask > 0.0, nbr_idx.astype(jnp.int32), jnp.int32(n))
    idx = jnp.pad(idx, ((0, n_pad - n), (0, 0)), constant_values=n)
    idx_flat = idx.reshape(-1).astype(jnp.int32)             # (n_pad * s,)

    out = feat
    num_layers = len(layer_params)
    for k, lp in enumerate(layer_params):
        is_last = (k + 1 == num_layers)
        h_all = _aggregator_transform(out, lp["wagg"], lp["bagg"],
                                      n_real=n, tile_m=tile_m)
        out = _combine(idx_flat, out, h_all, lp, s=s,
                       apply_post=not is_last, tile_m=tile_m,
                       out_dtype=jnp.float32 if is_last else jnp.bfloat16)
    return out[:n, :hidden_dim]


# ----------------------------------------------------------------------------
# Parameter prep: zero-pad to (DPAD, DPAD) / (1, DPAD), cast matmul weights to
# bf16, fold eval-BatchNorm scale 1/sqrt(1+1e-5) into layer-0 fc params.
# ----------------------------------------------------------------------------
def prepare_params(raw, num_layers=2, dpad=DPAD):
    bn_scale = 1.0 / jnp.sqrt(jnp.float32(1.0 + 1e-5))

    def pad_w(w):
        return jnp.pad(w, ((0, dpad - w.shape[0]), (0, dpad - w.shape[1])))

    def pad_b(b):
        return jnp.pad(b, ((0, 0), (0, dpad - b.shape[1])))

    layers = []
    for k in range(num_layers):
        scale = bn_scale if k + 1 < num_layers else jnp.float32(1.0)
        layers.append(dict(
            wagg=pad_w(raw[f"agg{k}_w"]).astype(jnp.bfloat16),
            bagg=pad_b(raw[f"agg{k}_b"]).astype(jnp.float32),
            wself=(pad_w(raw[f"fc{k}_w_self"]) * scale).astype(jnp.bfloat16),
            waggfc=(pad_w(raw[f"fc{k}_w_agg"]) * scale).astype(jnp.bfloat16),
            bfc=(pad_b(raw[f"fc{k}_b"]) * scale).astype(jnp.float32),
        ))
    return layers


# ----------------------------------------------------------------------------
# Pure-JAX reference (f32, un-folded BN) for a sanity check.
# ----------------------------------------------------------------------------
def _reference_forward(features, nbr_idx, nbr_mask, raw, num_layers=2):
    out = features
    for k in range(num_layers):
        h = jnp.maximum(out @ raw[f"agg{k}_w"] + raw[f"agg{k}_b"], 0.0)
        gath = h[nbr_idx]                                      # (N, S, D)
        gath = jnp.where(nbr_mask[:, :, None] > 0.0, gath, -jnp.inf)
        pooled = jnp.max(gath, axis=1)
        pooled = jnp.where(jnp.sum(nbr_mask, axis=1, keepdims=True) > 0.0,
                           pooled, 0.0)
        x = (out @ raw[f"fc{k}_w_self"] + pooled @ raw[f"fc{k}_w_agg"]
             + raw[f"fc{k}_b"])
        if k + 1 < num_layers:
            x = jnp.maximum(x, 0.0)
            x = x / jnp.sqrt(jnp.float32(1.0 + 1e-5))
            x = x / (jnp.sqrt(jnp.sum(x * x, axis=1, keepdims=True)) + 1e-6)
        out = x
    return out


def _linear_init(key, fan_in, shape):
    bound = 1.0 / jnp.sqrt(jnp.float32(fan_in))
    return jax.random.uniform(key, shape, jnp.float32, -bound, bound)


if __name__ == "__main__":
    N = 12            # number of nodes (same node set / identity mapping per layer)
    INPUT_DIM = 16
    HIDDEN_DIM = 32
    S = 4             # num_samples slots per node (padded + sentinel-masked)

    root = jax.random.PRNGKey(0)
    keys = jax.random.split(root, 16)

    features = jax.random.normal(keys[0], (N, INPUT_DIM), jnp.float32)

    # Deterministic neighbor table: node i -> {i+1, i+2, i+3} (mod N), padded to S.
    # Last node has no neighbors to exercise the "len(sampled_rows)==0 -> zeros" path.
    idx_rows, mask_rows = [], []
    for i in range(N):
        if i == N - 1:
            idx_rows.append([0] * S)
            mask_rows.append([0.0] * S)
        else:
            nbrs = [(i + 1) % N, (i + 2) % N, (i + 3) % N]
            idx_rows.append(nbrs + [0] * (S - len(nbrs)))
            mask_rows.append([1.0] * len(nbrs) + [0.0] * (S - len(nbrs)))
    nbr_idx = jnp.array(idx_rows, dtype=jnp.int32)
    nbr_mask = jnp.array(mask_rows, dtype=jnp.float32)

    raw = {
        # aggregator1l: MaxPoolAggregator(input_dim, input_dim).fc1
        "agg0_w": _linear_init(keys[1], INPUT_DIM, (INPUT_DIM, INPUT_DIM)),
        "agg0_b": _linear_init(keys[2], INPUT_DIM, (1, INPUT_DIM)),
        # fc1: Linear(2*input_dim, hidden_dim), split over the concat axis
        "fc0_w_self": _linear_init(keys[3], 2 * INPUT_DIM, (INPUT_DIM, HIDDEN_DIM)),
        "fc0_w_agg": _linear_init(keys[4], 2 * INPUT_DIM, (INPUT_DIM, HIDDEN_DIM)),
        "fc0_b": _linear_init(keys[5], 2 * INPUT_DIM, (1, HIDDEN_DIM)),
        # aggregator2l: MaxPoolAggregator(hidden_dim, hidden_dim).fc1
        "agg1_w": _linear_init(keys[6], HIDDEN_DIM, (HIDDEN_DIM, HIDDEN_DIM)),
        "agg1_b": _linear_init(keys[7], HIDDEN_DIM, (1, HIDDEN_DIM)),
        # fc2: Linear(2*hidden_dim, hidden_dim)
        "fc1_w_self": _linear_init(keys[8], 2 * HIDDEN_DIM, (HIDDEN_DIM, HIDDEN_DIM)),
        "fc1_w_agg": _linear_init(keys[9], 2 * HIDDEN_DIM, (HIDDEN_DIM, HIDDEN_DIM)),
        "fc1_b": _linear_init(keys[10], 2 * HIDDEN_DIM, (1, HIDDEN_DIM)),
    }

    layer_params = prepare_params(raw, num_layers=2)

    out = graphsage_forward(features, nbr_idx, nbr_mask, layer_params,
                            hidden_dim=HIDDEN_DIM)
    out = jax.block_until_ready(out)

    assert out.shape == (N, HIDDEN_DIM), out.shape
    assert bool(jnp.all(jnp.isfinite(out)))

    # Loose check vs. f32 reference (kernel uses bf16 matmuls/intermediates,
    # approx reciprocal, folded BN scale).
    ref = _reference_forward(features, nbr_idx, nbr_mask, raw, num_layers=2)
    max_err = float(jnp.max(jnp.abs(out - ref)))
    assert max_err < 5e-2, max_err

    print("KERNEL_OK")
</pallas_src>

<mosaic_0001>
module attributes {stable_mosaic.version = 11 : i64} {
  func.func @_hall_kernel(%arg0: i32, %arg1: memref<16x128xbf16, #tpu.memory_space<vmem>>, %arg2: memref<128x128xbf16, #tpu.memory_space<vmem>>, %arg3: memref<1x128xf32, #tpu.memory_space<vmem>>, %arg4: memref<16x128xbf16, #tpu.memory_space<vmem>>) attributes {dimension_semantics = [#tpu.dimension_semantics<parallel>], iteration_bounds = array<i64: 1>, scalar_prefetch = 0 : i64, scratch_operands = 0 : i64, tpu.core_type = #tpu.core_type<tc>, window_params = [{transform_indices = @transform_0, window_bounds = array<i64: 16, 128>}, {pipeline_mode = #tpu.pipeline_mode<synchronous>, transform_indices = @transform_1, window_bounds = array<i64: 128, 128>}, {pipeline_mode = #tpu.pipeline_mode<synchronous>, transform_indices = @transform_2, window_bounds = array<i64: 1, 128>}, {transform_indices = @transform_3, window_bounds = array<i64: 16, 128>}]} {
    %c0 = arith.constant 0 : index
    %c0_0 = arith.constant 0 : index
    %0 = vector.load %arg1[%c0, %c0_0] : memref<16x128xbf16, #tpu.memory_space<vmem>>, vector<16x128xbf16>
    %c0_1 = arith.constant 0 : index
    %c0_2 = arith.constant 0 : index
    %1 = vector.load %arg2[%c0_1, %c0_2] : memref<128x128xbf16, #tpu.memory_space<vmem>>, vector<128x128xbf16>
    %cst = arith.constant dense<0.000000e+00> : vector<16x128xf32>
    %2 = tpu.matmul %0, %1, %cst {dimension_numbers = #tpu.dot_dimension_numbers<[1], [0], [0], [1], [0, 0, 1, 1], [], []>} : vector<16x128xbf16>, vector<128x128xbf16>, vector<16x128xf32> -> vector<16x128xf32>
    %c0_3 = arith.constant 0 : index
    %c0_4 = arith.constant 0 : index
    %3 = vector.load %arg3[%c0_3, %c0_4] : memref<1x128xf32, #tpu.memory_space<vmem>>, vector<1x128xf32>
    %4 = vector.broadcast %3 : vector<1x128xf32> to vector<16x128xf32>
    %5 = arith.addf %2, %4 : vector<16x128xf32>
    %cst_5 = arith.constant 0.000000e+00 : f32
    %6 = vector.broadcast %cst_5 : f32 to vector<16x128xf32>
    %7 = arith.maximumf %5, %6 : vector<16x128xf32>
    %c16_i32 = arith.constant 16 : i32
    %8 = arith.muli %arg0, %c16_i32 : i32
    %9 = tpu.iota {dimensions = array<i32: 0>} : vector<16x1xi32>
    %10 = vector.broadcast %8 : i32 to vector<16x1xi32>
    %11 = arith.addi %10, %9 : vector<16x1xi32>
    %c12_i32 = arith.constant 12 : i32
    %12 = vector.broadcast %c12_i32 : i32 to vector<16x1xi32>
    %13 = arith.cmpi slt, %11, %12 : vector<16x1xi32>
    %cst_6 = arith.constant 0.000000e+00 : f32
    %14 = vector.shape_cast %13 : vector<16x1xi1> to vector<16x1xi1>
    %15 = vector.broadcast %14 : vector<16x1xi1> to vector<16x128xi1>
    %16 = vector.broadcast %cst_6 : f32 to vector<16x128xf32>
    %17 = arith.select %15, %7, %16 : vector<16x128xi1>, vector<16x128xf32>
    %18 = arith.truncf %17 : vector<16x128xf32> to vector<16x128xbf16>
    %c0_7 = arith.constant 0 : index
    %c0_8 = arith.constant 0 : index
    %19 = vector.load %arg4[%c0_7, %c0_8] : memref<16x128xbf16, #tpu.memory_space<vmem>>, vector<16x128xbf16>
    tpu.vector_store %arg4[%c0_7, %c0_8], %18 {strides = array<i32>} : memref<16x128xbf16, #tpu.memory_space<vmem>>, vector<16x128xbf16>,
    return
  }
  func.func @transform_0(%arg0: i32) -> (i32, i32) {
    %c0_i32 = arith.constant 0 : i32
    %c0_i32_0 = arith.constant 0 : i32
    return %arg0, %c0_i32 : i32, i32
  }
  func.func @transform_1(%arg0: i32) -> (i32, i32) {
    %c0_i32 = arith.constant 0 : i32
    %c0_i32_0 = arith.constant 0 : i32
    %c0_i32_1 = arith.constant 0 : i32
    return %c0_i32, %c0_i32_0 : i32, i32
  }
  func.func @transform_2(%arg0: i32) -> (i32, i32) {
    %c0_i32 = arith.constant 0 : i32
    %c0_i32_0 = arith.constant 0 : i32
    %c0_i32_1 = arith.constant 0 : i32
    return %c0_i32, %c0_i32_0 : i32, i32
  }
  func.func @transform_3(%arg0: i32) -> (i32, i32) {
    %c0_i32 = arith.constant 0 : i32
    %c0_i32_0 = arith.constant 0 : i32
    return %arg0, %c0_i32 : i32, i32
  }
}

</mosaic_0001>

<llo_original>
// kernel: tpu_custom_call.1
$region0: #{tpu_custom_call.1}
  #allocation0 [shape = 'u32[]', space=smem, size = 0x4, offset = 0x4, fixed_abs, tag = 'smem constant byte address 0x4 - core index']
  #allocation1 [shape = 'u32[144,128]{1,0:T(1,128)}', space=vmem, size = 0x12000, scoped, tag = 'internal scratch']
  %s0 = inlined_call_operand.hbm [shape: bf16[16,128], index: 0, kind: input, shape index: {}]
  %s1 = inlined_call_operand.hbm [shape: bf16[128,128], index: 1, kind: input, shape index: {}]
  %s2 = inlined_call_operand.vmem [shape: f32[1,128], index: 2, kind: input, shape index: {}]
  %s3 = inlined_call_operand.hbm [shape: bf16[16,128], index: 3, kind: output, shape index: {}]
  %s4 = sld [smem:[#allocation0]]
  $region30: #{tpu_custom_call.1} parent=0
    _
  %s6 = ssub.s32 1, %s4
  %s7 = scalar_select 0, %s6, %s4
  $region1: #{tpu_custom_call.1} parent=0
    #allocation2 [shape = 'u8[4096]{0}', space=vmem, size = 0x1000, scoped, tag = 'input window, operand 0, single buffered']
    #allocation3 [shape = 's32[1]{0}', space=sflag, size = 0x4, scoped, tag = 'scoped memory for tpu_custom_call.1']
    #allocation4 [shape = 's32[1]{0}', space=sflag, size = 0x4, scoped, tag = 'scoped memory for tpu_custom_call.1']
    #allocation5 [shape = 'u8[32768]{0}', space=vmem, size = 0x8000, scoped, tag = 'input window, operand 1, single buffered']
    #allocation6 [shape = 's32[1]{0}', space=sflag, size = 0x4, scoped, tag = 'scoped memory for tpu_custom_call.1']
    #allocation7 [shape = 'u8[4096]{0}', space=vmem, size = 0x1000, scoped, tag = 'output window, operand 0, single buffered']
    %8 = vsyncpa [#allocation3], 0
    %9 = vsyncpa [#allocation6], 0
    %10 = vsyncpa [#allocation4], 0
    // Predicated region
    $region2: #{tpu_custom_call.1} parent=1 // pred_check
      _
    $region3: #{tpu_custom_call.1} parent=1 // pred_check_branch
      %12 = sbr.rel (0) target = $region5
    $region4: #{tpu_custom_call.1} parent=1 // pred_region
      %s14 = ssub.s32 128, 128
      %15 = vsyncadd [#allocation3], %s14
      %s16 = sshll.u32 [#allocation2], 4
      %s17 = int_to_ptr.vmem [resolvable:$true] %s16
      %22 = dma.hbm_to_vmem [thread:$0]  %s0, 128, %s17, [#allocation3], 64, 64, 4
    $region5: #{tpu_custom_call.1} parent=1 // pred_fallthru
      _
    // Predicated region
    $region6: #{tpu_custom_call.1} parent=1 // pred_check
      _
    $region7: #{tpu_custom_call.1} parent=1 // pred_check_branch
      %24 = sbr.rel (0) target = $region9
    $region8: #{tpu_custom_call.1} parent=1 // pred_region
      %s26 = ssub.s32 1024, 1024
      %27 = vsyncadd [#allocation6], %s26
      %s28 = sshll.u32 [#allocation5], 4
      %s29 = int_to_ptr.vmem [resolvable:$true] %s28
      %34 = dma.hbm_to_vmem [thread:$0]  %s1, 1024, %s29, [#allocation6], 64, 64, 4
    $region9: #{tpu_custom_call.1} parent=1 // pred_fallthru
      _
    // Predicated region
    $region10: #{tpu_custom_call.1} parent=1 // pred_check
      _
    $region11: #{tpu_custom_call.1} parent=1 // pred_check_branch
      %36 = sbr.rel (0) target = $region13
    $region12: #{tpu_custom_call.1} parent=1 // pred_region
      _
    $region13: #{tpu_custom_call.1} parent=1 // pred_fallthru
      _
    // Predicated region
    $region14: #{tpu_custom_call.1} parent=1 // pred_check
      _
    $region15: #{tpu_custom_call.1} parent=1 // pred_check_branch
      %38 = sbr.rel (0) target = $region17
    $region16: #{tpu_custom_call.1} parent=1 // pred_region
      %39 = dma.done [#allocation3], 128
    $region17: #{tpu_custom_call.1} parent=1 // pred_fallthru
      _
    // Predicated region
    $region18: #{tpu_custom_call.1} parent=1 // pred_check
      _
    $region19: #{tpu_custom_call.1} parent=1 // pred_check_branch
      %41 = sbr.rel (0) target = $region21
    $region20: #{tpu_custom_call.1} parent=1 // pred_region
      %42 = dma.done [#allocation6], 1024
    $region21: #{tpu_custom_call.1} parent=1 // pred_fallthru
      _
    %v44 = vld [vmem:[#allocation2] sm:$0xf]
    %v45 = vld [vmem:[#allocation2 + $0x4] sm:$0xf]
    %v46 = vld [vmem:[#allocation5] sm:$0xf]
    %v47 = vld [vmem:[#allocation5 + $0x4] sm:$0xf]
    %v48 = vld [vmem:[#allocation5 + $0x8] sm:$0xf]
    %v49 = vld [vmem:[#allocation5 + $0xc] sm:$0xf]
    %v50 = vld [vmem:[#allocation5 + $0x10] sm:$0xf]
    %v51 = vld [vmem:[#allocation5 + $0x14] sm:$0xf]
    %v52 = vld [vmem:[#allocation5 + $0x18] sm:$0xf]
    %v53 = vld [vmem:[#allocation5 + $0x1c] sm:$0xf]
    %v54 = vld [vmem:[#allocation5 + $0x20] sm:$0xf]
    %v55 = vld [vmem:[#allocation5 + $0x24] sm:$0xf]
    %v56 = vld [vmem:[#allocation5 + $0x28] sm:$0xf]
    %v57 = vld [vmem:[#allocation5 + $0x2c] sm:$0xf]
    %v58 = vld [vmem:[#allocation5 + $0x30] sm:$0xf]
    %v59 = vld [vmem:[#allocation5 + $0x34] sm:$0xf]
    %v60 = vld [vmem:[#allocation5 + $0x38] sm:$0xf]
    %v61 = vld [vmem:[#allocation5 + $0x3c] sm:$0xf]
    %v62 = vld [vmem:[%s2] sm:$0x1]
    %v64 = vlaneseq
    %v65 = vshrl.u32 %v64, 7
    %v66 = vsub.s32 0, %v65
    %v67 = vrot.slane %v62, %v66
    %v71 = vunpack.c.l.b16 %v44
    %v72 = vunpack.c.l.b16 %v45
    %v73 = vpack.c.b16 %v72, %v71
    %v91 = vunpack.c.l.b16 %v46
    %v92 = vunpack.c.l.b16 %v47
    %v93 = vunpack.c.l.b16 %v48
    %v94 = vunpack.c.l.b16 %v49
    %v95 = vunpack.c.l.b16 %v50
    %v96 = vunpack.c.l.b16 %v51
    %v97 = vunpack.c.l.b16 %v52
    %v98 = vunpack.c.l.b16 %v53
    %v99 = vunpack.c.l.b16 %v54
    %v100 = vunpack.c.l.b16 %v55
    %v101 = vunpack.c.l.b16 %v56
    %v102 = vunpack.c.l.b16 %v57
    %v103 = vunpack.c.l.b16 %v58
    %v104 = vunpack.c.l.b16 %v59
    %v105 = vunpack.c.l.b16 %v60
    %v106 = vunpack.c.l.b16 %v61
    %v107 = vpack.c.b16 %v92, %v91
    %v108 = vpack.c.b16 %v94, %v93
    %v109 = vpack.c.b16 %v96, %v95
    %v110 = vpack.c.b16 %v98, %v97
    %v111 = vpack.c.b16 %v100, %v99
    %v112 = vpack.c.b16 %v102, %v101
    %v113 = vpack.c.b16 %v104, %v103
    %v114 = vpack.c.b16 %v106, %v105
    %123 = vmatprep.subr.bf16.mxu0 0
    %124 = vmatpush1.bf16.msra.mxu0 %v107
    %125 = vmatprep.subr.bf16.mxu0 0
    %126 = vmatpush1.bf16.msra.mxu0 %v108
    %127 = vmatprep.subr.bf16.mxu0 0
    %128 = vmatpush1.bf16.msra.mxu0 %v109
    %129 = vmatprep.subr.bf16.mxu0 0
    %130 = vmatpush1.bf16.msra.mxu0 %v110
    %131 = vmatprep.subr.bf16.mxu0 0
    %132 = vmatpush1.bf16.msra.mxu0 %v111
    %133 = vmatprep.subr.bf16.mxu0 0
    %134 = vmatpush1.bf16.msra.mxu0 %v112
    %135 = vmatprep.subr.bf16.mxu0 0
    %136 = vmatpush1.bf16.msra.mxu0 %v113
    %137 = vmatprep.subr.bf16.mxu0 0
    %138 = vmatpush1.bf16.msra.mxu0 %v114
    %139 = vmatprep.subr.bf16.mxu0 0
    %140 = vmatpush1.bf16.msra.mxu0 0
    %141 = vmatprep.subr.bf16.mxu0 0
    %142 = vmatpush1.bf16.msra.mxu0 0
    %143 = vmatprep.subr.bf16.mxu0 0
    %144 = vmatpush1.bf16.msra.mxu0 0
    %145 = vmatprep.subr.bf16.mxu0 0
    %146 = vmatpush1.bf16.msra.mxu0 0
    %147 = vmatprep.subr.bf16.mxu0 0
    %148 = vmatpush1.bf16.msra.mxu0 0
    %149 = vmatprep.subr.bf16.mxu0 0
    %150 = vmatpush1.bf16.msra.mxu0 0
    %151 = vmatprep.subr.bf16.mxu0 0
    %152 = vmatpush1.bf16.msra.mxu0 0
    %153 = vmatprep.subr.bf16.mxu0 0
    %154 = vmatpush1.bf16.msra.mxu0 0
    %155 = vmatprep.mubr.bf16.mxu0 0
    %156 = vmatmul.mubr.bf16.gmra.mrb[0].mxu0 %v73
    %v157 = vpop.f32.mrb[0].mxu0
    %v158 = vadd.f32 %v67, %v157
    %v159 = vpop.f32.mrb[0].mxu0
    %v160 = vpop.f32.mrb[0].mxu0
    %v161 = vadd.f32 %v67, %v160
    %v162 = vpop.f32.mrb[0].mxu0
    %163 = vdwg.mxu0
    %v164 = vmax.f32 %v158, 0.0
    %v165 = vmax.f32 %v161, 0.0
    %s166 = smul.u32 0, 16
    %v167 = vlaneseq
    %v168 = vshrl.u32 %v167, 7
    %v169 = vadd.s32 %v168, 8
    %v170 = vstv %s166
    %v171 = vadd.s32 %v170, %v168
    %v172 = vadd.s32 %v170, %v169
    %vm173 = vcmp.lt.s32.totalorder %v171, 12
    %vm174 = vcmp.lt.s32.totalorder %v172, 12
    %v175 = vsel %vm173, 1, 0
    %v176 = vsel %vm174, 1, 0
    %vm177 = vcmp.eq.s32.totalorder %v175, 1
    %vm178 = vcmp.eq.s32.totalorder %v176, 1
    %v179 = vsel %vm177, %v164, 0.0
    %v180 = vsel %vm178, %v165, 0.0
    %v181 = vpack.c.bf16 %v180, %v179
    %v183 = vunpack.c.l.b16 %v181
    %v184 = vunpack.c.h.b16 %v181
    %v185 = vpack.c.b16 %v183, %v183
    %v186 = vpack.c.b16 %v184, %v184
    %189 = vst [vmem:[#allocation7] sm:$0xf] %v185
    %190 = vst [vmem:[#allocation7 + $0x4] sm:$0xf] %v186
    // Predicated region
    $region22: #{tpu_custom_call.1} parent=1 // pred_check
      _
    $region23: #{tpu_custom_call.1} parent=1 // pred_check_branch
      %192 = sbr.rel (0) target = $region25
    $region24: #{tpu_custom_call.1} parent=1 // pred_region
      %s194 = ssub.s32 128, 128
      %195 = vsyncadd [#allocation4], %s194
      %s196 = sshll.u32 [#allocation7], 4
      %s197 = int_to_ptr.vmem [resolvable:$true] %s196
      %202 = dma.vmem_to_hbm [thread:$0]  %s197, 128, %s3, [#allocation4], 64, 64, 4
    $region25: #{tpu_custom_call.1} parent=1 // pred_fallthru
      _
    // Predicated region
    $region26: #{tpu_custom_call.1} parent=1 // pred_check
      _
    $region27: #{tpu_custom_call.1} parent=1 // pred_check_branch
      %204 = sbr.rel (0) target = $region29
    $region28: #{tpu_custom_call.1} parent=1 // pred_region
      %205 = dma.done [#allocation4], 128
    $region29: #{tpu_custom_call.1} parent=1 // pred_fallthru
      _
    %206 = vsyncpa [#allocation3], 1
    %207 = vsyncpa [#allocation6], 1
    %208 = vsyncpa [#allocation4], 1

</llo_original>
